<compile_context>
chip_gen: v7x
topology: tpu7x:2x2x1
jax: 0.10.0
libtpu: 0.0.40
codegen_flags: <defaults>
</compile_context>

<pallas_src>
import functools

import jax
import jax.numpy as jnp
from jax.experimental import pallas as pl
from jax.experimental.pallas import tpu as pltpu


def _conv3d_matmul_kernel(w_ref, p_ref, b_ref, o_ref, *, use_relu):
    # w_ref : (O, K)   compute dtype (f32 or bf16)  -- full weight slab
    # p_ref : (K, TM)  compute dtype                -- im2col patch tile
    # b_ref : (O, 1)   f32                          -- bias column
    # o_ref : (O, TM)  f32                          -- lane-dense output tile
    acc = jnp.dot(w_ref[...], p_ref[...], preferred_element_type=jnp.float32)
    acc = acc + b_ref[...]                       # (O, 1) broadcast over lanes
    if use_relu:
        acc = jnp.maximum(acc, 0.0)
    o_ref[...] = acc.astype(o_ref.dtype)


def _as_triple(v):
    if isinstance(v, (tuple, list)):
        assert len(v) == 3
        return tuple(int(x) for x in v)
    return (int(v),) * 3


def conv3d_pallas(x, weight, bias, *, kernel_size=(3, 3, 3), dilation=(1, 1, 1),
                  activation=None, use_bn=False,
                  compute_dtype=jnp.float32, tile_m=512):
    """Matches Conv3D.forward: conv3d(stride=1, padding=(k-1)*d//2) [+ act]."""
    # TODO(synk): BatchNorm3d (training-mode batch statistics) not implemented
    # in-kernel; the module default use_bn=False is what is supported.
    assert not use_bn

    KD, KH, KW = _as_triple(kernel_size)
    dd, dh, dw = _as_triple(dilation)
    N, C, D, H, W = x.shape
    O = weight.shape[0]

    pd = (KD - 1) * dd // 2
    ph = (KH - 1) * dh // 2
    pw = (KW - 1) * dw // 2
    D_out = D + 2 * pd - dd * (KD - 1)
    H_out = H + 2 * ph - dh * (KH - 1)
    W_out = W + 2 * pw - dw * (KW - 1)

    # ---------- glue: layout only, no conv FLOPs here ------------------------
    x_pad = jnp.pad(x, ((0, 0), (0, 0), (pd, pd), (ph, ph), (pw, pw)))

    # im2col: one shifted slice per kernel tap, stacked then flattened to (K, M)
    taps = []
    for kd in range(KD):
        for kh in range(KH):
            for kw in range(KW):
                taps.append(
                    x_pad[:, :,
                          kd * dd:kd * dd + D_out,
                          kh * dh:kh * dh + H_out,
                          kw * dw:kw * dw + W_out])          # (N, C, Do, Ho, Wo)
    T = KD * KH * KW
    K = T * C
    M = N * D_out * H_out * W_out
    patches = jnp.stack(taps, axis=0)                          # (T, N, C, Do, Ho, Wo)
    patches = jnp.transpose(patches, (0, 2, 1, 3, 4, 5))       # (T, C, N, Do, Ho, Wo)
    patches = patches.reshape(K, M)                            # K index = tap*C + c

    # Weight as one lane-dense 2D slab with matching K ordering (tap*C + c).
    w2 = jnp.transpose(weight, (0, 2, 3, 4, 1)).reshape(O, K)  # (O, K)
    b2 = bias.reshape(O, 1).astype(jnp.float32)                # (O, 1)

    patches = patches.astype(compute_dtype)
    w2 = w2.astype(compute_dtype)

    # Lane tile over M (multiple of 128); pad M if needed, slice off afterwards.
    TM = min(int(tile_m), max(128, ((M + 127) // 128) * 128))
    M_pad = pl.cdiv(M, TM) * TM
    if M_pad != M:
        patches = jnp.pad(patches, ((0, 0), (0, M_pad - M)))

    kernel = functools.partial(_conv3d_matmul_kernel,
                               use_relu=(activation == "relu"))

    itemsize = jnp.dtype(compute_dtype).itemsize
    cost = pl.CostEstimate(
        flops=2 * O * K * M_pad,
        transcendentals=0,
        bytes_accessed=(K * M_pad * itemsize + O * K * itemsize
                        + O * 4 + O * M_pad * 4))

    out2d = pl.pallas_call(
        kernel,
        out_shape=jax.ShapeDtypeStruct((O, M_pad), jnp.float32),
        grid_spec=pltpu.PrefetchScalarGridSpec(
            num_scalar_prefetch=0,
            grid=(M_pad // TM,),
            in_specs=[
                pl.BlockSpec((O, K), lambda m: (0, 0)),    # full weight slab
                pl.BlockSpec((K, TM), lambda m: (0, m)),   # patch lane tile
                pl.BlockSpec((O, 1), lambda m: (0, 0)),    # bias
            ],
            out_specs=pl.BlockSpec((O, TM), lambda m: (0, m)),
        ),
        compiler_params=pltpu.CompilerParams(
            dimension_semantics=("parallel",)),
        cost_estimate=cost,
    )(w2, patches, b2)

    out = out2d[:, :M].reshape(O, N, D_out, H_out, W_out)
    out = jnp.transpose(out, (1, 0, 2, 3, 4)).astype(x.dtype)  # NCDHW
    return out


def conv3d_reference(x, weight, bias, *, kernel_size=(3, 3, 3),
                     dilation=(1, 1, 1), activation=None):
    KD, KH, KW = _as_triple(kernel_size)
    dd, dh, dw = _as_triple(dilation)
    pd = (KD - 1) * dd // 2
    ph = (KH - 1) * dh // 2
    pw = (KW - 1) * dw // 2
    out = jax.lax.conv_general_dilated(
        x, weight,
        window_strides=(1, 1, 1),
        padding=((pd, pd), (ph, ph), (pw, pw)),
        rhs_dilation=(dd, dh, dw),
        dimension_numbers=("NCDHW", "OIDHW", "NCDHW"),
        precision=jax.lax.Precision.HIGHEST,
    )
    out = out + bias[None, :, None, None, None]
    if activation == "relu":
        out = jnp.maximum(out, 0.0)
    return out


if __name__ == "__main__":
    # Module config: Conv3D(in_channels=4, out_channels=8, kernel_size=(3,3,3),
    #                       dilation=(1,1,1), activation=relu, use_bn=False)
    in_channels, out_channels = 4, 8
    kernel_size, dilation = (3, 3, 3), (1, 1, 1)
    N, D, H, W = 2, 8, 16, 16

    key = jax.random.PRNGKey(0)
    kx, kw = jax.random.split(key)
    x = jax.random.normal(kx, (N, in_channels, D, H, W), dtype=jnp.float32)
    # _init_weights: normal(std=0.01) weights, zero bias.
    weight = 0.01 * jax.random.normal(
        kw, (out_channels, in_channels, *kernel_size), dtype=jnp.float32)
    bias = jnp.zeros((out_channels,), dtype=jnp.float32)

    ref = conv3d_reference(x, weight, bias, kernel_size=kernel_size,
                           dilation=dilation, activation="relu")

    # f32 compute path (portable default).
    out_f32 = conv3d_pallas(x, weight, bias, kernel_size=kernel_size,
                            dilation=dilation, activation="relu",
                            compute_dtype=jnp.float32)
    out_f32 = jax.block_until_ready(out_f32)
    assert out_f32.shape == (N, out_channels, D, H, W)
    assert jnp.allclose(out_f32, ref, atol=1e-3, rtol=1e-3), "f32 mismatch vs reference"

    # bf16 compute path (recommended on v6e/v7x; f32 accumulation in-kernel).
    out_bf16 = conv3d_pallas(x, weight, bias, kernel_size=kernel_size,
                             dilation=dilation, activation="relu",
                             compute_dtype=jnp.bfloat16)
    out_bf16 = jax.block_until_ready(out_bf16)
    assert out_bf16.shape == (N, out_channels, D, H, W)
    assert jnp.allclose(out_bf16, ref, atol=1e-2, rtol=1e-2), "bf16 mismatch vs reference"

    print("KERNEL_OK")
</pallas_src>

<mosaic_0001>
module attributes {stable_mosaic.version = 11 : i64} {
  func.func @_conv3d_matmul_kernel(%arg0: i32, %arg1: memref<8x108xf32, #tpu.memory_space<vmem>>, %arg2: memref<108x512xf32, #tpu.memory_space<vmem>>, %arg3: memref<8x1xf32, #tpu.memory_space<vmem>>, %arg4: memref<8x512xf32, #tpu.memory_space<vmem>>) attributes {dimension_semantics = [#tpu.dimension_semantics<parallel>], iteration_bounds = array<i64: 8>, scalar_prefetch = 0 : i64, scratch_operands = 0 : i64, tpu.core_type = #tpu.core_type<tc>, window_params = [{pipeline_mode = #tpu.pipeline_mode<synchronous>, transform_indices = @transform_0, window_bounds = array<i64: 8, 108>}, {transform_indices = @transform_1, window_bounds = array<i64: 108, 512>}, {pipeline_mode = #tpu.pipeline_mode<synchronous>, transform_indices = @transform_2, window_bounds = array<i64: 8, 1>}, {transform_indices = @transform_3, window_bounds = array<i64: 8, 512>}]} {
    %c0 = arith.constant 0 : index
    %c0_0 = arith.constant 0 : index
    %0 = vector.load %arg1[%c0, %c0_0] : memref<8x108xf32, #tpu.memory_space<vmem>>, vector<8x108xf32>
    %c0_1 = arith.constant 0 : index
    %c0_2 = arith.constant 0 : index
    %1 = vector.load %arg2[%c0_1, %c0_2] : memref<108x512xf32, #tpu.memory_space<vmem>>, vector<108x512xf32>
    %cst = arith.constant dense<0.000000e+00> : vector<8x512xf32>
    %2 = tpu.matmul %0, %1, %cst {dimension_numbers = #tpu.dot_dimension_numbers<[1], [0], [0], [1], [0, 0, 1, 1], [], []>} : vector<8x108xf32>, vector<108x512xf32>, vector<8x512xf32> -> vector<8x512xf32>
    %c0_3 = arith.constant 0 : index
    %c0_4 = arith.constant 0 : index
    %3 = vector.load %arg3[%c0_3, %c0_4] : memref<8x1xf32, #tpu.memory_space<vmem>>, vector<8x1xf32>
    %4 = vector.broadcast %3 : vector<8x1xf32> to vector<8x512xf32>
    %5 = arith.addf %2, %4 : vector<8x512xf32>
    %cst_5 = arith.constant 0.000000e+00 : f32
    %6 = vector.broadcast %cst_5 : f32 to vector<8x512xf32>
    %7 = arith.maximumf %5, %6 : vector<8x512xf32>
    %c0_6 = arith.constant 0 : index
    %c0_7 = arith.constant 0 : index
    %8 = vector.load %arg4[%c0_6, %c0_7] : memref<8x512xf32, #tpu.memory_space<vmem>>, vector<8x512xf32>
    tpu.vector_store %arg4[%c0_6, %c0_7], %7 {strides = array<i32>} : memref<8x512xf32, #tpu.memory_space<vmem>>, vector<8x512xf32>,
    return
  }
  func.func @transform_0(%arg0: i32) -> (i32, i32) {
    %c0_i32 = arith.constant 0 : i32
    %c0_i32_0 = arith.constant 0 : i32
    %c0_i32_1 = arith.constant 0 : i32
    return %c0_i32, %c0_i32_0 : i32, i32
  }
  func.func @transform_1(%arg0: i32) -> (i32, i32) {
    %c0_i32 = arith.constant 0 : i32
    %c0_i32_0 = arith.constant 0 : i32
    return %c0_i32, %arg0 : i32, i32
  }
  func.func @transform_2(%arg0: i32) -> (i32, i32) {
    %c0_i32 = arith.constant 0 : i32
    %c0_i32_0 = arith.constant 0 : i32
    %c0_i32_1 = arith.constant 0 : i32
    return %c0_i32, %c0_i32_0 : i32, i32
  }
  func.func @transform_3(%arg0: i32) -> (i32, i32) {
    %c0_i32 = arith.constant 0 : i32
    %c0_i32_0 = arith.constant 0 : i32
    return %c0_i32, %arg0 : i32, i32
  }
}

</mosaic_0001>

<llo_original>
// kernel: tpu_custom_call.1
$region0: #{tpu_custom_call.1}
  #allocation0 [shape = 'u32[]', space=smem, size = 0x4, offset = 0x4, fixed_abs, tag = 'smem constant byte address 0x4 - core index']
  #allocation1 [shape = 'u32[144,128]{1,0:T(1,128)}', space=vmem, size = 0x12000, scoped, tag = 'internal scratch']
  %s0 = inlined_call_operand.hbm [shape: f32[8,108], index: 0, kind: input, shape index: {}]
  %s1 = inlined_call_operand.hbm [shape: f32[108,4096], index: 1, kind: input, shape index: {}]
  %s2 = inlined_call_operand.vmem [shape: f32[8,1], index: 2, kind: input, shape index: {}]
  %s3 = inlined_call_operand.hbm [shape: f32[8,4096], index: 3, kind: output, shape index: {}]
  %s4 = sld [smem:[#allocation0]]
  $region53: #{tpu_custom_call.1} parent=0
    _
  %s6 = ssub.s32 1, %s4
  %s7 = scalar_select 0, %s6, %s4
  $region1: #{tpu_custom_call.1} parent=0
    #allocation2 [shape = 'u8[4096]{0}', space=vmem, size = 0x1000, scoped, tag = 'input window, operand 0, single buffered']
    #allocation3 [shape = 's32[2]{0}', space=sflag, size = 0x8, scoped, tag = 'scoped memory for tpu_custom_call.1']
    #allocation4 [shape = 's32[2]{0}', space=sflag, size = 0x8, scoped, tag = 'scoped memory for tpu_custom_call.1']
    #allocation5 [shape = 'u8[458752]{0}', space=vmem, size = 0x70000, scoped, tag = 'input window, operand 1']
    #allocation6 [shape = 's32[2]{0}', space=sflag, size = 0x8, scoped, tag = 'scoped memory for tpu_custom_call.1']
    #allocation7 [shape = 'u8[32768]{0}', space=vmem, size = 0x8000, scoped, tag = 'output window, operand 0']
    %8 = vsyncpa [#allocation3], 0
    %9 = vsyncpa [#allocation6], 0
    %s10 = scalar_lea.sflag [#allocation6], 1
    %11 = vsyncpa %s10, 0
    %12 = vsyncpa [#allocation4], 0
    %s13 = scalar_lea.sflag [#allocation4], 1
    %14 = vsyncpa %s13, 0
    loop: start=0, step=1, limit=10
    $region2: #{tpu_custom_call.1} parent=1 // loop_pre_header
      _
    $region3: #{tpu_custom_call.1} parent=1 // loop_header
      %s16 = sphi 0, %s20
      %p17 = scmp.ge.s32.totalorder %s16, 10
      %s24 = sphi 0, %s24
      %s26 = sphi 0, %s24
      %s27 = sphi 0, %s26
      %s41 = sphi 0, %s27
      %s47 = sphi 0, %s49
      %s50 = sphi 0, %s47
      %s51 = sphi 0, %s50
      %s67 = sphi 0, %s51
      %s71 = sphi 0, %s71
      %s73 = sphi 0, %s71
      %s74 = sphi 0, %s73
      %s88 = sphi 0, %s74
      %s94 = sphi 0, %s96
      %s97 = sphi 0, %s94
      %s98 = sphi 0, %s97
      %s114 = sphi 0, %s98
    $region4: #{tpu_custom_call.1} parent=1 // loop_header_branch
      %19 = sbr.rel (%p17) target = $region8
    $region5: #{tpu_custom_call.1} parent=1 // loop_body
      %s21 = ssub.s32 %s16, 1
      %s22 = ssub.s32 %s16, 2
      %s23 = sadd.s32 %s16, 1
      %s25 = sadd.s32 %s24, 1
      %p28 = scmp.eq.s32.totalorder %s16, 7
      %p29 = scmp.ne.s32.totalorder %s24, %s26
      %p30 = scmp.eq.s32.totalorder %s16, 0
      %p31 = por %p29, %p30
      %p32 = scmp.ne.s32.totalorder %s24, %s26
      %p33 = scmp.eq.s32.totalorder %s21, 7
      %p34 = por %p32, %p33
      %p35 = scmp.ne.s32.totalorder %s26, %s27
      %p36 = scmp.eq.s32.totalorder %s21, 0
      %p37 = por %p35, %p36
      %p38 = scmp.ne.s32.totalorder %s26, %s27
      %p39 = scmp.eq.s32.totalorder %s22, 7
      %p40 = por %p38, %p39
      %p42 = scmp.ne.s32.totalorder %s27, %s41
      %p43 = scmp.eq.s32.totalorder %s22, 0
      %p44 = por %p42, %p43
      %s45 = ssub.s32 %s16, %s23
      %p46 = scmp.eq.s32.totalorder %s45, 0
      %s48 = sadd.s32 %s47, 1
      %s49 = scalar_select %p46, %s47, %s48
      %p52 = pneg %p46
      %p53 = scmp.eq.s32.totalorder %s16, 7
      %p54 = por %p52, %p53
      %p55 = scmp.ne.s32.totalorder %s47, %s50
      %p56 = scmp.eq.s32.totalorder %s16, 0
      %p57 = por %p55, %p56
      %p58 = scmp.ne.s32.totalorder %s47, %s50
      %p59 = scmp.eq.s32.totalorder %s21, 7
      %p60 = por %p58, %p59
      %p61 = scmp.ne.s32.totalorder %s50, %s51
      %p62 = scmp.eq.s32.totalorder %s21, 0
      %p63 = por %p61, %p62
      %p64 = scmp.ne.s32.totalorder %s50, %s51
      %p65 = scmp.eq.s32.totalorder %s22, 7
      %p66 = por %p64, %p65
      %p68 = scmp.ne.s32.totalorder %s51, %s67
      %p69 = scmp.eq.s32.totalorder %s22, 0
      %p70 = por %p68, %p69
      %s72 = sadd.s32 %s71, 1
      %p75 = scmp.eq.s32.totalorder %s16, 7
      %p76 = scmp.ne.s32.totalorder %s71, %s73
      %p77 = scmp.eq.s32.totalorder %s16, 0
      %p78 = por %p76, %p77
      %p79 = scmp.ne.s32.totalorder %s71, %s73
      %p80 = scmp.eq.s32.totalorder %s21, 7
      %p81 = por %p79, %p80
      %p82 = scmp.ne.s32.totalorder %s73, %s74
      %p83 = scmp.eq.s32.totalorder %s21, 0
      %p84 = por %p82, %p83
      %p85 = scmp.ne.s32.totalorder %s73, %s74
      %p86 = scmp.eq.s32.totalorder %s22, 7
      %p87 = por %p85, %p86
      %p89 = scmp.ne.s32.totalorder %s74, %s88
      %p90 = scmp.eq.s32.totalorder %s22, 0
      %p91 = por %p89, %p90
      %s92 = ssub.s32 %s16, %s23
      %p93 = scmp.eq.s32.totalorder %s92, 0
      %s95 = sadd.s32 %s94, 1
      %s96 = scalar_select %p93, %s94, %s95
      %p99 = pneg %p93
      %p100 = scmp.eq.s32.totalorder %s16, 7
      %p101 = por %p99, %p100
      %p102 = scmp.ne.s32.totalorder %s94, %s97
      %p103 = scmp.eq.s32.totalorder %s16, 0
      %p104 = por %p102, %p103
      %p105 = scmp.ne.s32.totalorder %s94, %s97
      %p106 = scmp.eq.s32.totalorder %s21, 7
      %p107 = por %p105, %p106
      %p108 = scmp.ne.s32.totalorder %s97, %s98
      %p109 = scmp.eq.s32.totalorder %s21, 0
      %p110 = por %p108, %p109
      %p111 = scmp.ne.s32.totalorder %s97, %s98
      %p112 = scmp.eq.s32.totalorder %s22, 7
      %p113 = por %p111, %p112
      %p115 = scmp.ne.s32.totalorder %s98, %s114
      %p116 = scmp.eq.s32.totalorder %s22, 0
      %p117 = por %p115, %p116
      %p118 = scmp.le.s32.totalorder 1, %s16
      %p119 = scmp.lt.s32.totalorder %s16, 9
      %p120 = pnand %p118, %p119
      %p121 = pneg %p120
      // Predicated region
      $region9: #{tpu_custom_call.1} parent=5 // pred_check
        _
      $region10: #{tpu_custom_call.1} parent=5 // pred_check_branch
        %123 = sbr.rel (%p120) target = $region12
      $region11: #{tpu_custom_call.1} parent=5 // pred_region
        %s124 = ssub.s32 %s16, 1
        // Predicated region
        $region13: #{tpu_custom_call.1} parent=11 // pred_check
          %p125 = pneg %p37
        $region14: #{tpu_custom_call.1} parent=11 // pred_check_branch
          %127 = sbr.rel (%p125) target = $region16
        $region15: #{tpu_custom_call.1} parent=11 // pred_region
          %s129 = ssub.s32 128, 128
          %130 = vsyncadd [#allocation3], %s129
          %s132 = sshll.u32 [#allocation2], 4
          %s133 = int_to_ptr.vmem [resolvable:$true] %s132
          %135 = dma.hbm_to_vmem [thread:$0]  %s0, 128, %s133, [#allocation3]
        $region16: #{tpu_custom_call.1} parent=11 // pred_fallthru
          _
        // Predicated region
        $region17: #{tpu_custom_call.1} parent=11 // pred_check
          %p136 = pneg %p84
        $region18: #{tpu_custom_call.1} parent=11 // pred_check_branch
          %138 = sbr.rel (%p136) target = $region20
        $region19: #{tpu_custom_call.1} parent=11 // pred_region
          _
        $region20: #{tpu_custom_call.1} parent=11 // pred_fallthru
          _
      $region12: #{tpu_custom_call.1} parent=5 // pred_fallthru
        _
      %p139 = scmp.lt.s32.totalorder %s16, 8
      // Predicated region
      $region21: #{tpu_custom_call.1} parent=5 // pred_check
        %p140 = pneg %p139
      $region22: #{tpu_custom_call.1} parent=5 // pred_check_branch
        %142 = sbr.rel (%p140) target = $region24
      $region23: #{tpu_custom_call.1} parent=5 // pred_region
        // Predicated region
        $region25: #{tpu_custom_call.1} parent=23 // pred_check
          %p143 = pneg %p57
        $region26: #{tpu_custom_call.1} parent=23 // pred_check_branch
          %145 = sbr.rel (%p143) target = $region28
        $region27: #{tpu_custom_call.1} parent=23 // pred_region
          %s146 = sand.u32 %s47, 1
          %s147 = scalar_lea.sflag [#allocation6], %s146
          %s148 = sand.u32 %s47, 1
          %s149 = smul.addr %s148, 448
          %s150 = scalar_lea.vmem [#allocation5], %s149
          %s151 = smul.u32 4, %s16
          %s153 = ssub.s32 7168, 7168
          %154 = vsyncadd %s147, %s153
          %s155 = smul.addr %s151, 128
          %s156 = scalar_lea.hbm %s1, %s155
          %s157 = sshll.u32 %s150, 4
          %s158 = int_to_ptr.vmem [resolvable:$true] %s157
          %163 = dma.hbm_to_vmem [thread:$0]  %s156, 7168, %s158, %s147, 4096, 512, 32
        $region28: #{tpu_custom_call.1} parent=23 // pred_fallthru
          _
      $region24: #{tpu_custom_call.1} parent=5 // pred_fallthru
        _
      %p164 = scmp.le.s32.totalorder 1, %s16
      %p165 = scmp.lt.s32.totalorder %s16, 9
      %p166 = pnand %p164, %p165
      %p167 = pneg %p166
      // Predicated region
      $region29: #{tpu_custom_call.1} parent=5 // pred_check
        _
      $region30: #{tpu_custom_call.1} parent=5 // pred_check_branch
        %169 = sbr.rel (%p166) target = $region32
      $region31: #{tpu_custom_call.1} parent=5 // pred_region
        %s170 = ssub.s32 %s16, 1
        // Predicated region
        $region33: #{tpu_custom_call.1} parent=31 // pred_check
          %p171 = pneg %p37
        $region34: #{tpu_custom_call.1} parent=31 // pred_check_branch
          %173 = sbr.rel (%p171) target = $region36
        $region35: #{tpu_custom_call.1} parent=31 // pred_region
          %174 = dma.done [#allocation3], 128
        $region36: #{tpu_custom_call.1} parent=31 // pred_fallthru
          _
        %s175 = sand.u32 %s50, 1
        %s176 = scalar_lea.sflag [#allocation6], %s175
        %s177 = sand.u32 %s50, 1
        %s178 = smul.addr %s177, 448
        %s179 = scalar_lea.vmem [#allocation5], %s178
        // Predicated region
        $region37: #{tpu_custom_call.1} parent=31 // pred_check
          %p180 = pneg %p63
        $region38: #{tpu_custom_call.1} parent=31 // pred_check_branch
          %182 = sbr.rel (%p180) target = $region40
        $region39: #{tpu_custom_call.1} parent=31 // pred_region
          %183 = dma.done %s176, 7168
        $region40: #{tpu_custom_call.1} parent=31 // pred_fallthru
          _
        %p184 = pneg %p37
        %p185 = pneg %p34
        %s186 = sand.u32 %s50, 1
        %s187 = scalar_lea.sflag [#allocation6], %s186
        %s188 = sand.u32 %s50, 1
        %s189 = smul.addr %s188, 448
        %s190 = scalar_lea.vmem [#allocation5], %s189
        %p191 = pneg %p63
        %p192 = pneg %p60
        %p193 = pneg %p84
        %p194 = pneg %p81
        %p195 = pneg %p110
        %p196 = pneg %p107
        %s197 = sand.u32 %s97, 1
        %s198 = scalar_lea.sflag [#allocation4], %s197
        %s199 = sand.u32 %s97, 1
        %s200 = smul.addr %s199, 32
        %s201 = scalar_lea.vmem [#allocation7], %s200
        %s202 = smul.u32 4, %s21
        %s203 = smul.u32 4, %s21
        %v204 = vld [vmem:[#allocation2] sm:$0xff]
        %v205 = vld [vmem:[%s179] sm:$0xff]
        %v206 = vld [vmem:[%s179 + $0x8] sm:$0xff]
        %v207 = vld [vmem:[%s179 + $0x10] sm:$0xff]
        %v208 = vld [vmem:[%s179 + $0x18] sm:$0xff]
        %v209 = vld [vmem:[%s179 + $0x20] sm:$0xff]
        %v210 = vld [vmem:[%s179 + $0x28] sm:$0xff]
        %v211 = vld [vmem:[%s179 + $0x30] sm:$0xff]
        %v212 = vld [vmem:[%s179 + $0x38] sm:$0xff]
        %v213 = vld [vmem:[%s179 + $0x40] sm:$0xff]
        %v214 = vld [vmem:[%s179 + $0x48] sm:$0xff]
        %v215 = vld [vmem:[%s179 + $0x50] sm:$0xff]
        %v216 = vld [vmem:[%s179 + $0x58] sm:$0xff]
        %v217 = vld [vmem:[%s179 + $0x60] sm:$0xff]
        %v218 = vld [vmem:[%s179 + $0x68] sm:$0xff]
        %v219 = vld [vmem:[%s179 + $0x70] sm:$0xff]
        %v220 = vld [vmem:[%s179 + $0x78] sm:$0xff]
        %v221 = vld [vmem:[%s179 + $0x80] sm:$0xff]
        %v222 = vld [vmem:[%s179 + $0x88] sm:$0xff]
        %v223 = vld [vmem:[%s179 + $0x90] sm:$0xff]
        %v224 = vld [vmem:[%s179 + $0x98] sm:$0xff]
        %v225 = vld [vmem:[%s179 + $0xa0] sm:$0xff]
        %v226 = vld [vmem:[%s179 + $0xa8] sm:$0xff]
        %v227 = vld [vmem:[%s179 + $0xb0] sm:$0xff]
        %v228 = vld [vmem:[%s179 + $0xb8] sm:$0xff]
        %v229 = vld [vmem:[%s179 + $0xc0] sm:$0xff]
        %v230 = vld [vmem:[%s179 + $0xc8] sm:$0xff]
        %v231 = vld [vmem:[%s179 + $0xd0] sm:$0xff]
        %v232 = vld [vmem:[%s179 + $0xd8] sm:$0xff]
        %v233 = vld [vmem:[%s179 + $0xe0] sm:$0xff]
        %v234 = vld [vmem:[%s179 + $0xe8] sm:$0xff]
        %v235 = vld [vmem:[%s179 + $0xf0] sm:$0xff]
        %v236 = vld [vmem:[%s179 + $0xf8] sm:$0xff]
        %v237 = vld [vmem:[%s179 + $0x100] sm:$0xff]
        %v238 = vld [vmem:[%s179 + $0x108] sm:$0xff]
        %v239 = vld [vmem:[%s179 + $0x110] sm:$0xff]
        %v240 = vld [vmem:[%s179 + $0x118] sm:$0xff]
        %v241 = vld [vmem:[%s179 + $0x120] sm:$0xff]
        %v242 = vld [vmem:[%s179 + $0x128] sm:$0xff]
        %v243 = vld [vmem:[%s179 + $0x130] sm:$0xff]
        %v244 = vld [vmem:[%s179 + $0x138] sm:$0xff]
        %v245 = vld [vmem:[%s179 + $0x140] sm:$0xff]
        %v246 = vld [vmem:[%s179 + $0x148] sm:$0xff]
        %v247 = vld [vmem:[%s179 + $0x150] sm:$0xff]
        %v248 = vld [vmem:[%s179 + $0x158] sm:$0xff]
        %v249 = vld [vmem:[%s179 + $0x160] sm:$0xff]
        %v250 = vld [vmem:[%s179 + $0x168] sm:$0xff]
        %v251 = vld [vmem:[%s179 + $0x170] sm:$0xff]
        %v252 = vld [vmem:[%s179 + $0x178] sm:$0xff]
        %v253 = vld [vmem:[%s179 + $0x180] sm:$0xff]
        %v254 = vld [vmem:[%s179 + $0x188] sm:$0xff]
        %v255 = vld [vmem:[%s179 + $0x190] sm:$0xff]
        %v256 = vld [vmem:[%s179 + $0x198] sm:$0xff]
        %v257 = vld [vmem:[%s179 + $0x1a0] sm:$0xf]
        %v258 = vld [vmem:[%s179 + $0x1a8] sm:$0xf]
        %v259 = vld [vmem:[%s179 + $0x1b0] sm:$0xf]
        %v260 = vld [vmem:[%s179 + $0x1b8] sm:$0xf]
        %v261 = vld [vmem:[%s2] sm:$0xff]
        %263 = vset.pattern.permute.xlu0 0
        %264 = vperm.xlu0 %263, %v261
        %v265 = vpop.permute.xlu0 %264
        %vm267 = vcmask 883712
        %v269 = vsel %vm267, %v204, 0
        %vm271 = vcmask 1043456
        %v273 = vsel %vm271, %v257, 0
        %v276 = vsel %vm271, %v258, 0
        %v279 = vsel %vm271, %v259, 0
        %v282 = vsel %vm271, %v260, 0
        %284 = vmatprep.subr.mxu0 %v206
        %285 = vmatpush1.msra.mxu0 %v205
        %286 = vmatprep.subr.mxu0 %v210
        %287 = vmatpush1.msra.mxu0 %v209
        %288 = vmatprep.subr.mxu0 %v214
        %289 = vmatpush1.msra.mxu0 %v213
        %290 = vmatprep.subr.mxu0 %v218
        %291 = vmatpush1.msra.mxu0 %v217
        %292 = vmatprep.subr.mxu0 %v222
        %293 = vmatpush1.msra.mxu0 %v221
        %294 = vmatprep.subr.mxu0 %v226
        %295 = vmatpush1.msra.mxu0 %v225
        %296 = vmatprep.subr.mxu0 %v230
        %297 = vmatpush1.msra.mxu0 %v229
        %298 = vmatprep.subr.mxu0 %v234
        %299 = vmatpush1.msra.mxu0 %v233
        %300 = vmatprep.subr.mxu0 %v238
        %301 = vmatpush1.msra.mxu0 %v237
        %302 = vmatprep.subr.mxu0 %v242
        %303 = vmatpush1.msra.mxu0 %v241
        %304 = vmatprep.subr.mxu0 %v246
        %305 = vmatpush1.msra.mxu0 %v245
        %306 = vmatprep.subr.mxu0 %v250
        %307 = vmatpush1.msra.mxu0 %v249
        %308 = vmatprep.subr.mxu0 %v254
        %309 = vmatpush1.msra.mxu0 %v253
        %310 = vmatprep.subr.mxu0 %v276
        %311 = vmatpush1.msra.mxu0 %v273
        %312 = vmatprep.subr.mxu0 0.0
        %313 = vmatpush1.msra.mxu0 0.0
        %314 = vmatprep.subr.mxu0 0.0
        %315 = vmatpush1.msra.mxu0 0.0
        %316 = vmatprep.subr.mxu0 0.0
        %317 = vmatpush1.msra.mxu0 0.0
        %318 = vmatprep.subr.mxu0 0.0
        %319 = vmatpush1.msra.mxu0 0.0
        %320 = vmatprep.subr.mxu0 0.0
        %321 = vmatpush1.msra.mxu0 0.0
        %322 = vmatprep.subr.mxu0 0.0
        %323 = vmatpush1.msra.mxu0 0.0
        %324 = vmatprep.subr.mxu0 0.0
        %325 = vmatpush1.msra.mxu0 0.0
        %326 = vmatprep.subr.mxu0 0.0
        %327 = vmatpush1.msra.mxu0 0.0
        %328 = vmatprep.subr.mxu0 0.0
        %329 = vmatpush1.msra.mxu0 0.0
        %330 = vmatprep.subr.mxu0 0.0
        %331 = vmatpush1.msra.mxu0 0.0
        %332 = vmatprep.subr.mxu0 0.0
        %333 = vmatpush1.msra.mxu0 0.0
        %334 = vmatprep.subr.mxu0 0.0
        %335 = vmatpush1.msra.mxu0 0.0
        %336 = vmatprep.subr.mxu0 0.0
        %337 = vmatpush1.msra.mxu0 0.0
        %338 = vmatprep.subr.mxu0 0.0
        %339 = vmatpush1.msra.mxu0 0.0
        %340 = vmatprep.subr.mxu0 0.0
        %341 = vmatpush1.msra.mxu0 0.0
        %342 = vmatprep.subr.mxu0 0.0
        %343 = vmatpush1.msra.mxu0 0.0
        %344 = vmatprep.subr.mxu0 0.0
        %345 = vmatpush1.msra.mxu0 0.0
        %346 = vmatprep.subr.mxu0 0.0
        %347 = vmatpush1.msra.mxu0 0.0
        %348 = vmatprep.mubr.f32.mxu0 0.0
        %349 = vmatmul.mubr.f32.gmra.mrb[0].mxu0 %v269
        %v350 = vpop.f32.mrb[0].mxu0
        %v351 = vadd.f32 %v265, %v350
        %v352 = vpop.f32.mrb[0].mxu0
        %v353 = vadd.f32 %v265, %v352
        %354 = vdwg.mxu0
        %355 = vmatprep.subr.mxu0 %v208
        %356 = vmatpush1.msra.mxu0 %v207
        %357 = vmatprep.subr.mxu0 %v212
        %358 = vmatpush1.msra.mxu0 %v211
        %359 = vmatprep.subr.mxu0 %v216
        %360 = vmatpush1.msra.mxu0 %v215
        %361 = vmatprep.subr.mxu0 %v220
        %362 = vmatpush1.msra.mxu0 %v219
        %363 = vmatprep.subr.mxu0 %v224
        %364 = vmatpush1.msra.mxu0 %v223
        %365 = vmatprep.subr.mxu0 %v228
        %366 = vmatpush1.msra.mxu0 %v227
        %367 = vmatprep.subr.mxu0 %v232
        %368 = vmatpush1.msra.mxu0 %v231
        %369 = vmatprep.subr.mxu0 %v236
        %370 = vmatpush1.msra.mxu0 %v235
        %371 = vmatprep.subr.mxu0 %v240
        %372 = vmatpush1.msra.mxu0 %v239
        %373 = vmatprep.subr.mxu0 %v244
        %374 = vmatpush1.msra.mxu0 %v243
        %375 = vmatprep.subr.mxu0 %v248
        %376 = vmatpush1.msra.mxu0 %v247
        %377 = vmatprep.subr.mxu0 %v252
        %378 = vmatpush1.msra.mxu0 %v251
        %379 = vmatprep.subr.mxu0 %v256
        %380 = vmatpush1.msra.mxu0 %v255
        %381 = vmatprep.subr.mxu0 %v282
        %382 = vmatpush1.msra.mxu0 %v279
        %383 = vmatprep.subr.mxu0 0.0
        %384 = vmatpush1.msra.mxu0 0.0
        %385 = vmatprep.subr.mxu0 0.0
        %386 = vmatpush1.msra.mxu0 0.0
        %387 = vmatprep.subr.mxu0 0.0
        %388 = vmatpush1.msra.mxu0 0.0
        %389 = vmatprep.subr.mxu0 0.0
        %390 = vmatpush1.msra.mxu0 0.0
        %391 = vmatprep.subr.mxu0 0.0
        %392 = vmatpush1.msra.mxu0 0.0
        %393 = vmatprep.subr.mxu0 0.0
        %394 = vmatpush1.msra.mxu0 0.0
        %395 = vmatprep.subr.mxu0 0.0
        %396 = vmatpush1.msra.mxu0 0.0
        %397 = vmatprep.subr.mxu0 0.0
        %398 = vmatpush1.msra.mxu0 0.0
        %399 = vmatprep.subr.mxu0 0.0
        %400 = vmatpush1.msra.mxu0 0.0
        %401 = vmatprep.subr.mxu0 0.0
        %402 = vmatpush1.msra.mxu0 0.0
        %403 = vmatprep.subr.mxu0 0.0
        %404 = vmatpush1.msra.mxu0 0.0
        %405 = vmatprep.subr.mxu0 0.0
        %406 = vmatpush1.msra.mxu0 0.0
        %407 = vmatprep.subr.mxu0 0.0
        %408 = vmatpush1.msra.mxu0 0.0
        %409 = vmatprep.subr.mxu0 0.0
        %410 = vmatpush1.msra.mxu0 0.0
        %411 = vmatprep.subr.mxu0 0.0
        %412 = vmatpush1.msra.mxu0 0.0
        %413 = vmatprep.subr.mxu0 0.0
        %414 = vmatpush1.msra.mxu0 0.0
        %415 = vmatprep.subr.mxu0 0.0
        %416 = vmatpush1.msra.mxu0 0.0
        %417 = vmatprep.subr.mxu0 0.0
        %418 = vmatpush1.msra.mxu0 0.0
        %419 = vmatprep.mubr.f32.mxu0 0.0
        %420 = vmatmul.mubr.f32.gmra.mrb[0].mxu0 %v269
        %v421 = vpop.f32.mrb[0].mxu0
        %v422 = vadd.f32 %v265, %v421
        %v423 = vpop.f32.mrb[0].mxu0
        %v424 = vadd.f32 %v265, %v423
        %425 = vdwg.mxu0
        %v426 = vmax.f32 %v351, 0.0
        %v427 = vmax.f32 %v353, 0.0
        %v428 = vmax.f32 %v422, 0.0
        %v429 = vmax.f32 %v424, 0.0
        %430 = vst [vmem:[%s201] sm:$0xff] %v426
        %431 = vst [vmem:[%s201 + $0x8] sm:$0xff] %v427
        %432 = vst [vmem:[%s201 + $0x10] sm:$0xff] %v428
        %433 = vst [vmem:[%s201 + $0x18] sm:$0xff] %v429
        %s434 = sand.u32 %s97, 1
        %s435 = scalar_lea.sflag [#allocation4], %s434
        %s436 = sand.u32 %s97, 1
        %s437 = smul.addr %s436, 32
        %s438 = scalar_lea.vmem [#allocation7], %s437
        // Predicated region
        $region41: #{tpu_custom_call.1} parent=31 // pred_check
          %p439 = pneg %p107
        $region42: #{tpu_custom_call.1} parent=31 // pred_check_branch
          %441 = sbr.rel (%p439) target = $region44
        $region43: #{tpu_custom_call.1} parent=31 // pred_region
          %s442 = smul.u32 4, %s21
          %s444 = ssub.s32 512, 512
          %445 = vsyncadd %s435, %s444
          %s446 = smul.addr %s442, 128
          %s447 = scalar_lea.hbm %s3, %s446
          %s449 = sshll.u32 %s438, 4
          %s450 = int_to_ptr.vmem [resolvable:$true] %s449
          %452 = dma.vmem_to_hbm [thread:$0]  %s450, 512, %s447, %s435
        $region44: #{tpu_custom_call.1} parent=31 // pred_fallthru
          _
      $region32: #{tpu_custom_call.1} parent=5 // pred_fallthru
        _
      %p453 = scmp.le.s32.totalorder 2, %s16
      // Predicated region
      $region45: #{tpu_custom_call.1} parent=5 // pred_check
        %p454 = pneg %p453
      $region46: #{tpu_custom_call.1} parent=5 // pred_check_branch
        %456 = sbr.rel (%p454) target = $region48
      $region47: #{tpu_custom_call.1} parent=5 // pred_region
        %s457 = ssub.s32 %s16, 2
        // Predicated region
        $region49: #{tpu_custom_call.1} parent=47 // pred_check
          %p458 = pneg %p113
        $region50: #{tpu_custom_call.1} parent=47 // pred_check_branch
          %460 = sbr.rel (%p458) target = $region52
        $region51: #{tpu_custom_call.1} parent=47 // pred_region
          %s461 = sand.u32 %s98, 1
          %s462 = scalar_lea.sflag [#allocation4], %s461
          %s463 = sand.u32 %s98, 1
          %s464 = smul.addr %s463, 32
          %s465 = scalar_lea.vmem [#allocation7], %s464
          %466 = dma.done %s462, 512
        $region52: #{tpu_custom_call.1} parent=47 // pred_fallthru
          _
      $region48: #{tpu_custom_call.1} parent=5 // pred_fallthru
        _
    $region6: #{tpu_custom_call.1} parent=1 // loop_footer
      %s20 = sadd.s32 1, %s16
    $region7: #{tpu_custom_call.1} parent=1 // loop_footer_branch
      %15 = sbr.rel target = $region3
    $region8: #{tpu_custom_call.1} parent=1 // loop_exit
      _
    %467 = vsyncpa [#allocation3], 1
    %s468 = scalar_lea.sflag [#allocation3], 1
    %469 = vsyncpa %s468, 1
    %470 = vsyncpa [#allocation6], 1
    %s471 = scalar_lea.sflag [#allocation6], 1
    %472 = vsyncpa %s471, 1
    %473 = vsyncpa [#allocation4], 1
    %s474 = scalar_lea.sflag [#allocation4], 1
    %475 = vsyncpa %s474, 1

</llo_original>
